<compile_context>
chip_gen: v6e
topology: v6e:2x2x1
jax: 0.10.0
libtpu: 0.0.40
codegen_flags: <defaults>
</compile_context>

<pallas_src>
import functools

import jax
import jax.numpy as jnp
from jax.experimental import pallas as pl
from jax.experimental.pallas import tpu as pltpu

LANE = 128
NEG_BIG = -1e30  # python float: must NOT be a jnp array (would be a captured constant)


def _round_up(x, m):
    return ((x + m - 1) // m) * m


def _pad2d(x, rows, cols):
    return jnp.pad(x, ((0, rows - x.shape[0]), (0, cols - x.shape[1])))


def _masked_log_softmax(z, n_valid):
    """Row-wise log_softmax over the first n_valid lanes (rest are padding). f32 only."""
    col = jax.lax.broadcasted_iota(jnp.int32, z.shape, 1)
    valid = col < n_valid
    zm = jnp.where(valid, z, NEG_BIG)
    m = jnp.max(zm, axis=1, keepdims=True)
    s = zm - m
    lse = jnp.log(jnp.sum(jnp.where(valid, jnp.exp(s), 0.0), axis=1, keepdims=True))
    return s - lse


# --------------------------------------------------------------------------
# Fused small/mid-graph kernel: both GCN layers in one pallas_call (all VMEM).
# --------------------------------------------------------------------------
def gcn_fused_kernel(a_ref, x_ref, w1_ref, b1_ref, w2_ref, b2_ref, out_ref, *,
                     n_classes):
    a = a_ref[...]                                                     # bf16 [Np, Np]
    xw1 = jnp.dot(x_ref[...], w1_ref[...],
                  preferred_element_type=jnp.float32)                  # f32
    h = jnp.dot(a, xw1.astype(jnp.bfloat16),
                preferred_element_type=jnp.float32) + b1_ref[...]
    h = jnp.maximum(h, 0.0)
    # F.dropout(x, training=self.training): identity at inference.
    # TODO(synk): training-mode dropout (p=0.5) via pltpu.prng_random_bits if needed.
    xw2 = jnp.dot(h.astype(jnp.bfloat16), w2_ref[...],
                  preferred_element_type=jnp.float32)
    z = jnp.dot(a, xw2.astype(jnp.bfloat16),
                preferred_element_type=jnp.float32) + b2_ref[...]
    out_ref[...] = _masked_log_softmax(z, n_classes).astype(out_ref.dtype)


# --------------------------------------------------------------------------
# Tiled large-graph kernels.
# --------------------------------------------------------------------------
def xw_kernel(x_ref, w_ref, o_ref):
    """X @ W1 for one row tile (computed once, reused across all A_hat K-tiles)."""
    o_ref[...] = jnp.dot(x_ref[...], w_ref[...],
                         preferred_element_type=jnp.float32).astype(o_ref.dtype)


def agg_relu_w2_kernel(a_ref, xw_ref, b1_ref, w2_ref, out_ref, acc_ref):
    """Layer 1 aggregation with layer-2's X@W fused into the finalize:
       out = relu(sum_k A[i,k] @ XW1[k] + b1) @ W2  (bf16 output, no H round-trip)."""
    k = pl.program_id(1)

    @pl.when(k == 0)
    def _():
        acc_ref[...] = jnp.zeros_like(acc_ref)

    acc_ref[...] += jnp.dot(a_ref[...], xw_ref[...],
                            preferred_element_type=jnp.float32)

    @pl.when(k == pl.num_programs(1) - 1)
    def _():
        h = jnp.maximum(acc_ref[...] + b1_ref[...], 0.0)
        # dropout: identity at inference.
        out_ref[...] = jnp.dot(h.astype(jnp.bfloat16), w2_ref[...],
                               preferred_element_type=jnp.float32).astype(out_ref.dtype)


def agg_logsoftmax_kernel(a_ref, xw_ref, b2_ref, out_ref, acc_ref, *, n_classes):
    """Layer 2 aggregation: z = sum_k A[i,k] @ XW2[k] + b2, masked log_softmax."""
    k = pl.program_id(1)

    @pl.when(k == 0)
    def _():
        acc_ref[...] = jnp.zeros_like(acc_ref)

    acc_ref[...] += jnp.dot(a_ref[...], xw_ref[...],
                            preferred_element_type=jnp.float32)

    @pl.when(k == pl.num_programs(1) - 1)
    def _():
        z = acc_ref[...] + b2_ref[...]
        out_ref[...] = _masked_log_softmax(z, n_classes).astype(out_ref.dtype)


def gcn_forward_tiled(a_p, x_p, w1, b1, w2, b2, *, n_classes, tm, tk):
    n_p = a_p.shape[0]
    f_in_p = x_p.shape[1]
    hid_p = w1.shape[1]
    cls_p = w2.shape[1]
    cp = pltpu.CompilerParams(dimension_semantics=("parallel", "arbitrary"),
                              vmem_limit_bytes=32 << 20)

    # Hoisted X @ W1 (one pass over node rows, W1 resident).
    xw1 = pl.pallas_call(
        xw_kernel,
        out_shape=jax.ShapeDtypeStruct((n_p, hid_p), jnp.bfloat16),
        grid=(n_p // tm,),
        in_specs=[pl.BlockSpec((tm, f_in_p), lambda i: (i, 0)),
                  pl.BlockSpec((f_in_p, hid_p), lambda i: (0, 0))],
        out_specs=pl.BlockSpec((tm, hid_p), lambda i: (i, 0)),
        compiler_params=pltpu.CompilerParams(dimension_semantics=("parallel",),
                                             vmem_limit_bytes=32 << 20),
    )(x_p, w1)

    # Layer 1 aggregation (+ ReLU + fused H @ W2) -> XW2 directly, no H in HBM.
    xw2 = pl.pallas_call(
        agg_relu_w2_kernel,
        out_shape=jax.ShapeDtypeStruct((n_p, cls_p), jnp.bfloat16),
        grid=(n_p // tm, n_p // tk),
        in_specs=[pl.BlockSpec((tm, tk), lambda i, k: (i, k)),        # A_hat tile
                  pl.BlockSpec((tk, hid_p), lambda i, k: (k, 0)),     # XW1 K-block
                  pl.BlockSpec((1, hid_p), lambda i, k: (0, 0)),      # b1 (resident)
                  pl.BlockSpec((hid_p, cls_p), lambda i, k: (0, 0))], # W2 (resident)
        out_specs=pl.BlockSpec((tm, cls_p), lambda i, k: (i, 0)),
        scratch_shapes=[pltpu.VMEM((tm, hid_p), jnp.float32)],
        compiler_params=cp,
    )(a_p, xw1, b1, w2)

    # Layer 2 aggregation + bias + masked log_softmax.
    out = pl.pallas_call(
        functools.partial(agg_logsoftmax_kernel, n_classes=n_classes),
        out_shape=jax.ShapeDtypeStruct((n_p, cls_p), jnp.float32),
        grid=(n_p // tm, n_p // tk),
        in_specs=[pl.BlockSpec((tm, tk), lambda i, k: (i, k)),
                  pl.BlockSpec((tk, cls_p), lambda i, k: (k, 0)),
                  pl.BlockSpec((1, cls_p), lambda i, k: (0, 0))],
        out_specs=pl.BlockSpec((tm, cls_p), lambda i, k: (i, 0)),
        scratch_shapes=[pltpu.VMEM((tm, cls_p), jnp.float32)],
        compiler_params=cp,
    )(a_p, xw2, b2)
    return out


# --------------------------------------------------------------------------
# Glue (plain JAX): normalized adjacency, padding, dispatch.
# --------------------------------------------------------------------------
def normalized_adjacency(edge_index, edge_weight, num_nodes):
    """Dense equivalent of PyG gcn_norm (add_self_loops=True):
    A_hat = D^{-1/2} (A + I) D^{-1/2}, A[dst, src] = edge_weight.
    Degrees via segment-sum; D^{-1/2} scaling applied per-edge; self-loops folded into
    the same scatter so only ONE dense N x N array is built (cast to bf16 by the caller).
    """
    src = edge_index[0]
    dst = edge_index[1]
    w = edge_weight.astype(jnp.float32)
    deg = jnp.zeros((num_nodes,), jnp.float32).at[dst].add(w) + 1.0  # + self-loop
    dinv = jax.lax.rsqrt(deg)                                         # deg >= 1
    vals = jnp.concatenate([dinv[dst] * w * dinv[src], dinv * dinv])
    rows = jnp.concatenate([dst, jnp.arange(num_nodes, dtype=dst.dtype)])
    cols = jnp.concatenate([src, jnp.arange(num_nodes, dtype=src.dtype)])
    a = jnp.zeros((num_nodes, num_nodes), jnp.float32).at[rows, cols].add(vals)
    return a


def gcn_forward(x, edge_index, edge_weight, params, *,
                fused_max_nodes=2048, tile=512):
    # fused_max_nodes=2048 keeps the fused path's VMEM footprint (<~32 MiB incl. double
    # buffering) inside v7x's 64 MiB physical VMEM; v5e/v6e (128 MiB) could go higher.
    n, f_in = x.shape
    hidden = params["w1"].shape[1]
    n_classes = params["w2"].shape[1]
    f_in_p = _round_up(f_in, LANE)
    hid_p = _round_up(hidden, LANE)
    cls_p = _round_up(n_classes, LANE)

    a_bf16 = normalized_adjacency(edge_index, edge_weight, n).astype(jnp.bfloat16)

    # Lane-padded, zero-extended parameters (padded lanes stay exactly zero).
    w1 = _pad2d(params["w1"], f_in_p, hid_p).astype(jnp.bfloat16)
    b1 = _pad2d(params["b1"][None, :], 1, hid_p).astype(jnp.float32)
    w2 = _pad2d(params["w2"], hid_p, cls_p).astype(jnp.bfloat16)
    b2 = _pad2d(params["b2"][None, :], 1, cls_p).astype(jnp.float32)

    if n <= fused_max_nodes:
        # Single fused pallas_call: A_hat DMA'd once, no HBM round-trip of H / XW.
        # (Single grid step -> runs on one v7x TensorCore; crossover is benchmark-tuned.)
        n_p = _round_up(n, LANE)
        a_p = _pad2d(a_bf16, n_p, n_p)
        x_p = _pad2d(x, n_p, f_in_p).astype(jnp.bfloat16)
        out = pl.pallas_call(
            functools.partial(gcn_fused_kernel, n_classes=n_classes),
            out_shape=jax.ShapeDtypeStruct((n_p, cls_p), jnp.float32),
            grid=(1,),
            in_specs=[
                pl.BlockSpec((n_p, n_p), lambda i: (0, 0)),
                pl.BlockSpec((n_p, f_in_p), lambda i: (0, 0)),
                pl.BlockSpec((f_in_p, hid_p), lambda i: (0, 0)),
                pl.BlockSpec((1, hid_p), lambda i: (0, 0)),
                pl.BlockSpec((hid_p, cls_p), lambda i: (0, 0)),
                pl.BlockSpec((1, cls_p), lambda i: (0, 0)),
            ],
            out_specs=pl.BlockSpec((n_p, cls_p), lambda i: (0, 0)),
            compiler_params=pltpu.CompilerParams(
                dimension_semantics=("arbitrary",),
                vmem_limit_bytes=48 << 20),
        )(a_p, x_p, w1, b1, w2, b2)
    else:
        # Tiled / software-pipelined path. tm == tk padding unit avoids the lcm blow-up;
        # row tile halved when the row-tile count would be odd (v7x 2-TC balance).
        tk = tile
        n_p = _round_up(n, tile)
        tm = tile if (n_p // tile) % 2 == 0 else tile // 2
        a_p = _pad2d(a_bf16, n_p, n_p)
        x_p = _pad2d(x, n_p, f_in_p).astype(jnp.bfloat16)
        out = gcn_forward_tiled(a_p, x_p, w1, b1, w2, b2,
                                n_classes=n_classes, tm=tm, tk=tk)
    return out[:n, :n_classes]


def gcn_reference(x, edge_index, edge_weight, params):
    """Pure-JAX reference mirroring the kernels' bf16-input / f32-accumulate scheme."""
    n = x.shape[0]
    a = normalized_adjacency(edge_index, edge_weight, n).astype(jnp.bfloat16)

    def layer(h, w, b):
        xw = jnp.dot(h.astype(jnp.bfloat16), w.astype(jnp.bfloat16),
                     preferred_element_type=jnp.float32).astype(jnp.bfloat16)
        return jnp.dot(a, xw, preferred_element_type=jnp.float32) + b[None, :]

    h = jnp.maximum(layer(x, params["w1"], params["b1"]), 0.0)
    z = layer(h, params["w2"], params["b2"])
    return jax.nn.log_softmax(z, axis=1)


def _glorot(key, shape):
    fan_in, fan_out = shape
    limit = jnp.sqrt(6.0 / (fan_in + fan_out))
    return jax.random.uniform(key, shape, jnp.float32, -limit, limit)


def _make_inputs(key, num_nodes, num_features, hidden, num_classes, num_edges):
    k_x, k_src, k_dst, k_ew, k_w1, k_w2 = jax.random.split(key, 6)
    x = jax.random.normal(k_x, (num_nodes, num_features), jnp.float32)
    src = jax.random.randint(k_src, (num_edges,), 0, num_nodes)
    dst = jax.random.randint(k_dst, (num_edges,), 0, num_nodes)
    edge_index = jnp.stack([src, dst]).astype(jnp.int32)
    edge_weight = jax.random.uniform(k_ew, (num_edges,), jnp.float32, 0.5, 1.5)
    params = {
        "w1": _glorot(k_w1, (num_features, hidden)),
        "b1": jnp.zeros((hidden,), jnp.float32),
        "w2": _glorot(k_w2, (hidden, num_classes)),
        "b2": jnp.zeros((num_classes,), jnp.float32),
    }
    return x, edge_index, edge_weight, params


if __name__ == "__main__":
    fwd = jax.jit(gcn_forward)
    fwd_tiled = jax.jit(functools.partial(gcn_forward, fused_max_nodes=0))

    # Case 1: toy config -> fused single-pallas_call path.
    x, ei, ew, params = _make_inputs(jax.random.PRNGKey(0), num_nodes=32,
                                     num_features=16, hidden=16,
                                     num_classes=8, num_edges=64)
    out = fwd(x, ei, ew, params)
    jax.block_until_ready(out)
    ref = gcn_reference(x, ei, ew, params)
    assert out.shape == (32, 8)
    assert jnp.allclose(jnp.sum(jnp.exp(out), axis=1), 1.0, atol=1e-4)
    assert jnp.allclose(out, ref, atol=3e-2, rtol=3e-2)

    # Case 2: mid-size graph (n=700) -> now ALSO the fused path (fused_max_nodes=2048),
    # avoiding the tiled path's double A_hat streaming + H round-trip.
    x2, ei2, ew2, params2 = _make_inputs(jax.random.PRNGKey(1), num_nodes=700,
                                         num_features=48, hidden=16,
                                         num_classes=8, num_edges=4000)
    out2 = fwd(x2, ei2, ew2, params2)
    jax.block_until_ready(out2)
    ref2 = gcn_reference(x2, ei2, ew2, params2)
    assert out2.shape == (700, 8)
    assert jnp.allclose(jnp.sum(jnp.exp(out2), axis=1), 1.0, atol=1e-4)
    assert jnp.allclose(out2, ref2, atol=3e-2, rtol=3e-2)

    # Case 3: tiled path exercised explicitly (forced via fused_max_nodes=0).
    x3, ei3, ew3, params3 = _make_inputs(jax.random.PRNGKey(2), num_nodes=1200,
                                         num_features=64, hidden=16,
                                         num_classes=10, num_edges=6000)
    out3 = fwd_tiled(x3, ei3, ew3, params3)
    jax.block_until_ready(out3)
    ref3 = gcn_reference(x3, ei3, ew3, params3)
    assert out3.shape == (1200, 10)
    assert jnp.allclose(jnp.sum(jnp.exp(out3), axis=1), 1.0, atol=1e-4)
    assert jnp.allclose(out3, ref3, atol=3e-2, rtol=3e-2)

    print("KERNEL_OK")
</pallas_src>

<mosaic_0001>
module attributes {stable_mosaic.version = 11 : i64} {
  func.func private @main(%arg0: i32) attributes {dimension_semantics = [#tpu.dimension_semantics<core_parallel>], iteration_bounds = array<i64: 2>, tpu.core_type = #tpu.core_type<sc_scalar_subcore>, window_params = []} {
    return
  }
}

module attributes {stable_mosaic.version = 11 : i64} {
  func.func private @main(%arg0: i32) attributes {dimension_semantics = [#tpu.dimension_semantics<core_parallel>], iteration_bounds = array<i64: 2>, tpu.core_type = #tpu.core_type<sc_scalar_subcore>, window_params = []} {
    return
  }
}

module attributes {stable_mosaic.version = 11 : i64} {
  func.func @gcn_fused_kernel(%arg0: i32, %arg1: memref<128x128xbf16, #tpu.memory_space<vmem>>, %arg2: memref<128x128xbf16, #tpu.memory_space<vmem>>, %arg3: memref<128x128xbf16, #tpu.memory_space<vmem>>, %arg4: memref<1x128xf32, #tpu.memory_space<vmem>>, %arg5: memref<128x128xbf16, #tpu.memory_space<vmem>>, %arg6: memref<1x128xf32, #tpu.memory_space<vmem>>, %arg7: memref<128x128xf32, #tpu.memory_space<vmem>>) attributes {dimension_semantics = [#tpu.dimension_semantics<arbitrary>], iteration_bounds = array<i64: 1>, scalar_prefetch = 0 : i64, scratch_operands = 0 : i64, tpu.core_type = #tpu.core_type<tc>, window_params = [{pipeline_mode = #tpu.pipeline_mode<synchronous>, transform_indices = @transform_0, window_bounds = array<i64: 128, 128>}, {pipeline_mode = #tpu.pipeline_mode<synchronous>, transform_indices = @transform_1, window_bounds = array<i64: 128, 128>}, {pipeline_mode = #tpu.pipeline_mode<synchronous>, transform_indices = @transform_2, window_bounds = array<i64: 128, 128>}, {pipeline_mode = #tpu.pipeline_mode<synchronous>, transform_indices = @transform_3, window_bounds = array<i64: 1, 128>}, {pipeline_mode = #tpu.pipeline_mode<synchronous>, transform_indices = @transform_4, window_bounds = array<i64: 128, 128>}, {pipeline_mode = #tpu.pipeline_mode<synchronous>, transform_indices = @transform_5, window_bounds = array<i64: 1, 128>}, {pipeline_mode = #tpu.pipeline_mode<synchronous>, transform_indices = @transform_6, window_bounds = array<i64: 128, 128>}]} {
    %c0 = arith.constant 0 : index
    %c0_0 = arith.constant 0 : index
    %0 = vector.load %arg1[%c0, %c0_0] : memref<128x128xbf16, #tpu.memory_space<vmem>>, vector<128x128xbf16>
    %c0_1 = arith.constant 0 : index
    %c0_2 = arith.constant 0 : index
    %1 = vector.load %arg2[%c0_1, %c0_2] : memref<128x128xbf16, #tpu.memory_space<vmem>>, vector<128x128xbf16>
    %c0_3 = arith.constant 0 : index
    %c0_4 = arith.constant 0 : index
    %2 = vector.load %arg3[%c0_3, %c0_4] : memref<128x128xbf16, #tpu.memory_space<vmem>>, vector<128x128xbf16>
    %cst = arith.constant dense<0.000000e+00> : vector<128x128xf32>
    %3 = tpu.matmul %1, %2, %cst {dimension_numbers = #tpu.dot_dimension_numbers<[1], [0], [0], [1], [0, 0, 1, 1], [], []>} : vector<128x128xbf16>, vector<128x128xbf16>, vector<128x128xf32> -> vector<128x128xf32>
    %4 = arith.truncf %3 : vector<128x128xf32> to vector<128x128xbf16>
    %cst_5 = arith.constant dense<0.000000e+00> : vector<128x128xf32>
    %5 = tpu.matmul %0, %4, %cst_5 {dimension_numbers = #tpu.dot_dimension_numbers<[1], [0], [0], [1], [0, 0, 1, 1], [], []>} : vector<128x128xbf16>, vector<128x128xbf16>, vector<128x128xf32> -> vector<128x128xf32>
    %c0_6 = arith.constant 0 : index
    %c0_7 = arith.constant 0 : index
    %6 = vector.load %arg4[%c0_6, %c0_7] : memref<1x128xf32, #tpu.memory_space<vmem>>, vector<1x128xf32>
    %7 = vector.broadcast %6 : vector<1x128xf32> to vector<128x128xf32>
    %8 = arith.addf %5, %7 : vector<128x128xf32>
    %cst_8 = arith.constant 0.000000e+00 : f32
    %9 = vector.broadcast %cst_8 : f32 to vector<128x128xf32>
    %10 = arith.maximumf %8, %9 : vector<128x128xf32>
    %11 = arith.truncf %10 : vector<128x128xf32> to vector<128x128xbf16>
    %c0_9 = arith.constant 0 : index
    %c0_10 = arith.constant 0 : index
    %12 = vector.load %arg5[%c0_9, %c0_10] : memref<128x128xbf16, #tpu.memory_space<vmem>>, vector<128x128xbf16>
    %cst_11 = arith.constant dense<0.000000e+00> : vector<128x128xf32>
    %13 = tpu.matmul %11, %12, %cst_11 {dimension_numbers = #tpu.dot_dimension_numbers<[1], [0], [0], [1], [0, 0, 1, 1], [], []>} : vector<128x128xbf16>, vector<128x128xbf16>, vector<128x128xf32> -> vector<128x128xf32>
    %14 = arith.truncf %13 : vector<128x128xf32> to vector<128x128xbf16>
    %cst_12 = arith.constant dense<0.000000e+00> : vector<128x128xf32>
    %15 = tpu.matmul %0, %14, %cst_12 {dimension_numbers = #tpu.dot_dimension_numbers<[1], [0], [0], [1], [0, 0, 1, 1], [], []>} : vector<128x128xbf16>, vector<128x128xbf16>, vector<128x128xf32> -> vector<128x128xf32>
    %c0_13 = arith.constant 0 : index
    %c0_14 = arith.constant 0 : index
    %16 = vector.load %arg6[%c0_13, %c0_14] : memref<1x128xf32, #tpu.memory_space<vmem>>, vector<1x128xf32>
    %17 = vector.broadcast %16 : vector<1x128xf32> to vector<128x128xf32>
    %18 = arith.addf %15, %17 : vector<128x128xf32>
    %19 = tpu.iota {dimensions = array<i32: 1>} : vector<128x128xi32>
    %c8_i32 = arith.constant 8 : i32
    %20 = vector.broadcast %c8_i32 : i32 to vector<128x128xi32>
    %21 = arith.cmpi slt, %19, %20 : vector<128x128xi32>
    %cst_15 = arith.constant -1.000000e+30 : f32
    %22 = vector.broadcast %cst_15 : f32 to vector<128x128xf32>
    %23 = arith.select %21, %18, %22 : vector<128x128xi1>, vector<128x128xf32>
    %cst_16 = arith.constant dense<0xFF800000> : vector<128xf32>
    %24 = vector.multi_reduction <maximumf>, %23, %cst_16 [1] : vector<128x128xf32> to vector<128xf32>
    %25 = vector.shape_cast %24 : vector<128xf32> to vector<128x1xf32>
    %26 = vector.broadcast %25 : vector<128x1xf32> to vector<128x128xf32>
    %27 = arith.subf %23, %26 : vector<128x128xf32>
    %28 = math.exp %27 : vector<128x128xf32>
    %cst_17 = arith.constant 0.000000e+00 : f32
    %29 = vector.broadcast %cst_17 : f32 to vector<128x128xf32>
    %30 = arith.select %21, %28, %29 : vector<128x128xi1>, vector<128x128xf32>
    %cst_18 = arith.constant dense<0.000000e+00> : vector<128xf32>
    %31 = vector.multi_reduction <add>, %30, %cst_18 [1] : vector<128x128xf32> to vector<128xf32>
    %32 = vector.shape_cast %31 : vector<128xf32> to vector<128x1xf32>
    %33 = math.log %32 : vector<128x1xf32>
    %34 = vector.broadcast %33 : vector<128x1xf32> to vector<128x128xf32>
    %35 = arith.subf %27, %34 : vector<128x128xf32>
    %c0_19 = arith.constant 0 : index
    %c0_20 = arith.constant 0 : index
    %36 = vector.load %arg7[%c0_19, %c0_20] : memref<128x128xf32, #tpu.memory_space<vmem>>, vector<128x128xf32>
    tpu.vector_store %arg7[%c0_19, %c0_20], %35 {strides = array<i32>} : memref<128x128xf32, #tpu.memory_space<vmem>>, vector<128x128xf32>,
    return
  }
  func.func @transform_0(%arg0: i32) -> (i32, i32) {
    %c0_i32 = arith.constant 0 : i32
    %c0_i32_0 = arith.constant 0 : i32
    %c0_i32_1 = arith.constant 0 : i32
    return %c0_i32, %c0_i32_0 : i32, i32
  }
  func.func @transform_1(%arg0: i32) -> (i32, i32) {
    %c0_i32 = arith.constant 0 : i32
    %c0_i32_0 = arith.constant 0 : i32
    %c0_i32_1 = arith.constant 0 : i32
    return %c0_i32, %c0_i32_0 : i32, i32
  }
  func.func @transform_2(%arg0: i32) -> (i32, i32) {
    %c0_i32 = arith.constant 0 : i32
    %c0_i32_0 = arith.constant 0 : i32
    %c0_i32_1 = arith.constant 0 : i32
    return %c0_i32, %c0_i32_0 : i32, i32
  }
  func.func @transform_3(%arg0: i32) -> (i32, i32) {
    %c0_i32 = arith.constant 0 : i32
    %c0_i32_0 = arith.constant 0 : i32
    %c0_i32_1 = arith.constant 0 : i32
    return %c0_i32, %c0_i32_0 : i32, i32
  }
  func.func @transform_4(%arg0: i32) -> (i32, i32) {
    %c0_i32 = arith.constant 0 : i32
    %c0_i32_0 = arith.constant 0 : i32
    %c0_i32_1 = arith.constant 0 : i32
    return %c0_i32, %c0_i32_0 : i32, i32
  }
  func.func @transform_5(%arg0: i32) -> (i32, i32) {
    %c0_i32 = arith.constant 0 : i32
    %c0_i32_0 = arith.constant 0 : i32
    %c0_i32_1 = arith.constant 0 : i32
    return %c0_i32, %c0_i32_0 : i32, i32
  }
  func.func @transform_6(%arg0: i32) -> (i32, i32) {
    %c0_i32 = arith.constant 0 : i32
    %c0_i32_0 = arith.constant 0 : i32
    %c0_i32_1 = arith.constant 0 : i32
    return %c0_i32, %c0_i32_0 : i32, i32
  }
}

</mosaic_0001>

<llo_original>
// kernel: gcn_forward.1
$region0: #{gcn_forward.1}
  #allocation0 [shape = 'u32[]', space=smem, size = 0x4, offset = 0x4, fixed_abs, tag = 'smem constant byte address 0x4 - core index']
  #allocation1 [shape = 'u32[144,128]{1,0:T(1,128)}', space=vmem, size = 0x12000, scoped, tag = 'internal scratch']
  %s0 = inlined_call_operand.vmem [shape: bf16[128,128], index: 0, kind: input, shape index: {}]
  %s1 = inlined_call_operand.vmem [shape: bf16[128,128], index: 1, kind: input, shape index: {}]
  %s2 = inlined_call_operand.vmem [shape: bf16[128,128], index: 2, kind: input, shape index: {}]
  %s3 = inlined_call_operand.vmem [shape: f32[1,128], index: 3, kind: input, shape index: {}]
  %s4 = inlined_call_operand.vmem [shape: bf16[128,128], index: 4, kind: input, shape index: {}]
  %s5 = inlined_call_operand.vmem [shape: f32[1,128], index: 5, kind: input, shape index: {}]
  %s6 = inlined_call_operand.vmem [shape: f32[128,128], index: 6, kind: output, shape index: {}]
  %s7 = sld [smem:[#allocation0]]
  $region34: #{gcn_forward.1} parent=0
    _
  %s9 = ssub.s32 1, %s7
  %s10 = scalar_select 0, %s9, %s7
  // Predicated region
  $region2: #{gcn_forward.1} parent=0 // pred_check
    _
  $region3: #{gcn_forward.1} parent=0 // pred_check_branch
    %12 = sbr.rel (0) target = $region5
  $region4: #{gcn_forward.1} parent=0 // pred_region
    _
  $region5: #{gcn_forward.1} parent=0 // pred_fallthru
    _
  // Predicated region
  $region6: #{gcn_forward.1} parent=0 // pred_check
    _
  $region7: #{gcn_forward.1} parent=0 // pred_check_branch
    %14 = sbr.rel (0) target = $region9
  $region8: #{gcn_forward.1} parent=0 // pred_region
    _
  $region9: #{gcn_forward.1} parent=0 // pred_fallthru
    _
  // Predicated region
  $region10: #{gcn_forward.1} parent=0 // pred_check
    _
  $region11: #{gcn_forward.1} parent=0 // pred_check_branch
    %16 = sbr.rel (0) target = $region13
  $region12: #{gcn_forward.1} parent=0 // pred_region
    _
  $region13: #{gcn_forward.1} parent=0 // pred_fallthru
    _
  // Predicated region
  $region14: #{gcn_forward.1} parent=0 // pred_check
    _
  $region15: #{gcn_forward.1} parent=0 // pred_check_branch
    %18 = sbr.rel (0) target = $region17
  $region16: #{gcn_forward.1} parent=0 // pred_region
    _
  $region17: #{gcn_forward.1} parent=0 // pred_fallthru
    _
  // Predicated region
  $region18: #{gcn_forward.1} parent=0 // pred_check
    _
  $region19: #{gcn_forward.1} parent=0 // pred_check_branch
    %20 = sbr.rel (0) target = $region21
  $region20: #{gcn_forward.1} parent=0 // pred_region
    _
  $region21: #{gcn_forward.1} parent=0 // pred_fallthru
    _
  // Predicated region
  $region22: #{gcn_forward.1} parent=0 // pred_check
    _
  $region23: #{gcn_forward.1} parent=0 // pred_check_branch
    %22 = sbr.rel (0) target = $region25
  $region24: #{gcn_forward.1} parent=0 // pred_region
    _
  $region25: #{gcn_forward.1} parent=0 // pred_fallthru
    _
  %v24 = vld [vmem:[%s0] sm:$0xf]
  %v25 = vld [vmem:[%s0 + $0x4] sm:$0xf]
  %v26 = vld [vmem:[%s0 + $0x8] sm:$0xf]
  %v27 = vld [vmem:[%s0 + $0xc] sm:$0xf]
  %v28 = vld [vmem:[%s0 + $0x10] sm:$0xf]
  %v29 = vld [vmem:[%s0 + $0x14] sm:$0xf]
  %v30 = vld [vmem:[%s0 + $0x18] sm:$0xf]
  %v31 = vld [vmem:[%s0 + $0x1c] sm:$0xf]
  %v32 = vld [vmem:[%s0 + $0x20] sm:$0xf]
  %v33 = vld [vmem:[%s0 + $0x24] sm:$0xf]
  %v34 = vld [vmem:[%s0 + $0x28] sm:$0xf]
  %v35 = vld [vmem:[%s0 + $0x2c] sm:$0xf]
  %v36 = vld [vmem:[%s0 + $0x30] sm:$0xf]
  %v37 = vld [vmem:[%s0 + $0x34] sm:$0xf]
  %v38 = vld [vmem:[%s0 + $0x38] sm:$0xf]
  %v39 = vld [vmem:[%s0 + $0x3c] sm:$0xf]
  %v40 = vld [vmem:[%s1] sm:$0xf]
  %v41 = vld [vmem:[%s1 + $0x4] sm:$0xf]
  %v42 = vld [vmem:[%s1 + $0x8] sm:$0xf]
  %v43 = vld [vmem:[%s1 + $0xc] sm:$0xf]
  %v44 = vld [vmem:[%s1 + $0x10] sm:$0xf]
  %v45 = vld [vmem:[%s1 + $0x14] sm:$0xf]
  %v46 = vld [vmem:[%s1 + $0x18] sm:$0xf]
  %v47 = vld [vmem:[%s1 + $0x1c] sm:$0xf]
  %v48 = vld [vmem:[%s1 + $0x20] sm:$0xf]
  %v49 = vld [vmem:[%s1 + $0x24] sm:$0xf]
  %v50 = vld [vmem:[%s1 + $0x28] sm:$0xf]
  %v51 = vld [vmem:[%s1 + $0x2c] sm:$0xf]
  %v52 = vld [vmem:[%s1 + $0x30] sm:$0xf]
  %v53 = vld [vmem:[%s1 + $0x34] sm:$0xf]
  %v54 = vld [vmem:[%s1 + $0x38] sm:$0xf]
  %v55 = vld [vmem:[%s1 + $0x3c] sm:$0xf]
  %v56 = vld [vmem:[%s2] sm:$0xf]
  %v57 = vld [vmem:[%s2 + $0x4] sm:$0xf]
  %v58 = vld [vmem:[%s2 + $0x8] sm:$0xf]
  %v59 = vld [vmem:[%s2 + $0xc] sm:$0xf]
  %v60 = vld [vmem:[%s2 + $0x10] sm:$0xf]
  %v61 = vld [vmem:[%s2 + $0x14] sm:$0xf]
  %v62 = vld [vmem:[%s2 + $0x18] sm:$0xf]
  %v63 = vld [vmem:[%s2 + $0x1c] sm:$0xf]
  %v64 = vld [vmem:[%s2 + $0x20] sm:$0xf]
  %v65 = vld [vmem:[%s2 + $0x24] sm:$0xf]
  %v66 = vld [vmem:[%s2 + $0x28] sm:$0xf]
  %v67 = vld [vmem:[%s2 + $0x2c] sm:$0xf]
  %v68 = vld [vmem:[%s2 + $0x30] sm:$0xf]
  %v69 = vld [vmem:[%s2 + $0x34] sm:$0xf]
  %v70 = vld [vmem:[%s2 + $0x38] sm:$0xf]
  %v71 = vld [vmem:[%s2 + $0x3c] sm:$0xf]
  %v88 = vunpack.c.l.b16 %v40
  %v89 = vunpack.c.l.b16 %v41
  %v90 = vunpack.c.l.b16 %v42
  %v91 = vunpack.c.l.b16 %v43
  %v92 = vunpack.c.l.b16 %v44
  %v93 = vunpack.c.l.b16 %v45
  %v94 = vunpack.c.l.b16 %v46
  %v95 = vunpack.c.l.b16 %v47
  %v96 = vunpack.c.l.b16 %v48
  %v97 = vunpack.c.l.b16 %v49
  %v98 = vunpack.c.l.b16 %v50
  %v99 = vunpack.c.l.b16 %v51
  %v100 = vunpack.c.l.b16 %v52
  %v101 = vunpack.c.l.b16 %v53
  %v102 = vunpack.c.l.b16 %v54
  %v103 = vunpack.c.l.b16 %v55
  %v104 = vpack.c.b16 %v89, %v88
  %v105 = vpack.c.b16 %v91, %v90
  %v106 = vpack.c.b16 %v93, %v92
  %v107 = vpack.c.b16 %v95, %v94
  %v108 = vpack.c.b16 %v97, %v96
  %v109 = vpack.c.b16 %v99, %v98
  %v110 = vpack.c.b16 %v101, %v100
  %v111 = vpack.c.b16 %v103, %v102
  %v136 = vunpack.c.l.b16 %v56
  %v137 = vunpack.c.l.b16 %v57
  %v138 = vunpack.c.l.b16 %v58
  %v139 = vunpack.c.l.b16 %v59
  %v140 = vunpack.c.l.b16 %v60
  %v141 = vunpack.c.l.b16 %v61
  %v142 = vunpack.c.l.b16 %v62
  %v143 = vunpack.c.l.b16 %v63
  %v144 = vunpack.c.l.b16 %v64
  %v145 = vunpack.c.l.b16 %v65
  %v146 = vunpack.c.l.b16 %v66
  %v147 = vunpack.c.l.b16 %v67
  %v148 = vunpack.c.l.b16 %v68
  %v149 = vunpack.c.l.b16 %v69
  %v150 = vunpack.c.l.b16 %v70
  %v151 = vunpack.c.l.b16 %v71
  %v152 = vpack.c.b16 %v137, %v136
  %v153 = vpack.c.b16 %v139, %v138
  %v154 = vpack.c.b16 %v141, %v140
  %v155 = vpack.c.b16 %v143, %v142
  %v156 = vpack.c.b16 %v145, %v144
  %v157 = vpack.c.b16 %v147, %v146
  %v158 = vpack.c.b16 %v149, %v148
  %v159 = vpack.c.b16 %v151, %v150
  %168 = vmatprep.subr.bf16.mxu0 0
  %169 = vmatpush1.bf16.msra.mxu0 %v159
  %170 = vmatprep.subr.bf16.mxu0 0
  %171 = vmatpush1.bf16.msra.mxu0 %v158
  %172 = vmatprep.subr.bf16.mxu0 0
  %173 = vmatpush1.bf16.msra.mxu0 %v157
  %174 = vmatprep.subr.bf16.mxu0 0
  %175 = vmatpush1.bf16.msra.mxu0 %v156
  %176 = vmatprep.subr.bf16.mxu0 0
  %177 = vmatpush1.bf16.msra.mxu0 %v155
  %178 = vmatprep.subr.bf16.mxu0 0
  %179 = vmatpush1.bf16.msra.mxu0 %v154
  %180 = vmatprep.subr.bf16.mxu0 0
  %181 = vmatpush1.bf16.msra.mxu0 %v153
  %182 = vmatprep.subr.bf16.mxu0 0
  %183 = vmatpush1.bf16.msra.mxu0 %v152
  %184 = vmatprep.subr.bf16.mxu0 0
  %185 = vmatpush2.bf16.msra.mxu0 0
  %186 = vmatprep.subr.bf16.mxu0 0
  %187 = vmatpush2.bf16.msra.mxu0 0
  %188 = vmatprep.subr.bf16.mxu0 0
  %189 = vmatpush2.bf16.msra.mxu0 0
  %190 = vmatprep.subr.bf16.mxu0 0
  %191 = vmatpush2.bf16.msra.mxu0 0
  %192 = vmatprep.subr.bf16.mxu0 0
  %193 = vmatpush2.bf16.msra.mxu0 0
  %194 = vmatprep.subr.bf16.mxu0 0
  %195 = vmatpush2.bf16.msra.mxu0 0
  %196 = vmatprep.subr.bf16.mxu0 0
  %197 = vmatpush2.bf16.msra.mxu0 0
  %198 = vmatprep.subr.bf16.mxu0 0
  %199 = vmatpush2.bf16.msra.mxu0 0
  %200 = vmatprep.mubr.bf16.mxu0 0
  %201 = vmatmul.mubr.bf16.gmra.mxu0 %v104
  %v202 = vpop.f32.mrf.mxu0
  %v203 = vadd.f32 0.0, %v202
  %v204 = vpop.f32.mrf.mxu0
  %v205 = vpop.f32.mrf.mxu0
  %v206 = vadd.f32 0.0, %v205
  %v207 = vpop.f32.mrf.mxu0
  %208 = vmatprep.mubr.bf16.mxu0 0
  %209 = vmatmul.mubr.bf16.gmra.mxu0 %v105
  %v210 = vpop.f32.mrf.mxu0
  %v211 = vadd.f32 0.0, %v210
  %v212 = vpop.f32.mrf.mxu0
  %v213 = vpop.f32.mrf.mxu0
  %v214 = vadd.f32 0.0, %v213
  %v215 = vpop.f32.mrf.mxu0
  %216 = vmatprep.mubr.bf16.mxu0 0
  %217 = vmatmul.mubr.bf16.gmra.mxu0 %v106
  %v218 = vpop.f32.mrf.mxu0
  %v219 = vadd.f32 0.0, %v218
  %v220 = vpop.f32.mrf.mxu0
  %v221 = vpop.f32.mrf.mxu0
  %v222 = vadd.f32 0.0, %v221
  %v223 = vpop.f32.mrf.mxu0
  %224 = vmatprep.mubr.bf16.mxu0 0
  %225 = vmatmul.mubr.bf16.gmra.mxu0 %v107
  %v226 = vpop.f32.mrf.mxu0
  %v227 = vadd.f32 0.0, %v226
  %v228 = vpop.f32.mrf.mxu0
  %v229 = vpop.f32.mrf.mxu0
  %v230 = vadd.f32 0.0, %v229
  %v231 = vpop.f32.mrf.mxu0
  %232 = vmatprep.mubr.bf16.mxu0 0
  %233 = vmatmul.mubr.bf16.gmra.mxu0 %v108
  %v234 = vpop.f32.mrf.mxu0
  %v235 = vadd.f32 0.0, %v234
  %v236 = vpop.f32.mrf.mxu0
  %v237 = vpop.f32.mrf.mxu0
  %v238 = vadd.f32 0.0, %v237
  %v239 = vpop.f32.mrf.mxu0
  %240 = vmatprep.mubr.bf16.mxu0 0
  %241 = vmatmul.mubr.bf16.gmra.mxu0 %v109
  %v242 = vpop.f32.mrf.mxu0
  %v243 = vadd.f32 0.0, %v242
  %v244 = vpop.f32.mrf.mxu0
  %v245 = vpop.f32.mrf.mxu0
  %v246 = vadd.f32 0.0, %v245
  %v247 = vpop.f32.mrf.mxu0
  %248 = vmatprep.mubr.bf16.mxu0 0
  %249 = vmatmul.mubr.bf16.gmra.mxu0 %v110
  %v250 = vpop.f32.mrf.mxu0
  %v251 = vadd.f32 0.0, %v250
  %v252 = vpop.f32.mrf.mxu0
  %v253 = vpop.f32.mrf.mxu0
  %v254 = vadd.f32 0.0, %v253
  %v255 = vpop.f32.mrf.mxu0
  %256 = vmatprep.mubr.bf16.mxu0 0
  %257 = vmatmul.mubr.bf16.gmra.mxu0 %v111
  %v258 = vpop.f32.mrf.mxu0
  %v259 = vadd.f32 0.0, %v258
  %v260 = vpop.f32.mrf.mxu0
  %v261 = vpop.f32.mrf.mxu0
  %v262 = vadd.f32 0.0, %v261
  %v263 = vpop.f32.mrf.mxu0
  %264 = vdwg.mxu0
  %v265 = vpack.c.bf16 %v206, %v203
  %v266 = vpack.c.bf16 %v214, %v211
  %v267 = vpack.c.bf16 %v222, %v219
  %v268 = vpack.c.bf16 %v230, %v227
  %v269 = vpack.c.bf16 %v238, %v235
  %v270 = vpack.c.bf16 %v246, %v243
  %v271 = vpack.c.bf16 %v254, %v251
  %v272 = vpack.c.bf16 %v262, %v259
  %v273 = vld [vmem:[%s3] sm:$0x1]
  %v275 = vlaneseq
  %v276 = vshrl.u32 %v275, 7
  %v277 = vsub.s32 0, %v276
  %v278 = vrot.slane %v273, %v277
  %v296 = vunpack.c.l.b16 %v24
  %v297 = vunpack.c.l.b16 %v25
  %v298 = vunpack.c.l.b16 %v26
  %v299 = vunpack.c.l.b16 %v27
  %v300 = vunpack.c.l.b16 %v28
  %v301 = vunpack.c.l.b16 %v29
  %v302 = vunpack.c.l.b16 %v30
  %v303 = vunpack.c.l.b16 %v31
  %v304 = vunpack.c.l.b16 %v32
  %v305 = vunpack.c.l.b16 %v33
  %v306 = vunpack.c.l.b16 %v34
  %v307 = vunpack.c.l.b16 %v35
  %v308 = vunpack.c.l.b16 %v36
  %v309 = vunpack.c.l.b16 %v37
  %v310 = vunpack.c.l.b16 %v38
  %v311 = vunpack.c.l.b16 %v39
  %v312 = vpack.c.b16 %v297, %v296
  %v313 = vpack.c.b16 %v299, %v298
  %v314 = vpack.c.b16 %v301, %v300
  %v315 = vpack.c.b16 %v303, %v302
  %v316 = vpack.c.b16 %v305, %v304
  %v317 = vpack.c.b16 %v307, %v306
  %v318 = vpack.c.b16 %v309, %v308
  %v319 = vpack.c.b16 %v311, %v310
  %328 = vmatprep.subr.bf16.mxu0 0
  %329 = vmatpush1.bf16.msra.mxu0 %v272
  %330 = vmatprep.subr.bf16.mxu0 0
  %331 = vmatpush1.bf16.msra.mxu0 %v271
  %332 = vmatprep.subr.bf16.mxu0 0
  %333 = vmatpush1.bf16.msra.mxu0 %v270
  %334 = vmatprep.subr.bf16.mxu0 0
  %335 = vmatpush1.bf16.msra.mxu0 %v269
  %336 = vmatprep.subr.bf16.mxu0 0
  %337 = vmatpush1.bf16.msra.mxu0 %v268
  %338 = vmatprep.subr.bf16.mxu0 0
  %339 = vmatpush1.bf16.msra.mxu0 %v267
  %340 = vmatprep.subr.bf16.mxu0 0
  %341 = vmatpush1.bf16.msra.mxu0 %v266
  %342 = vmatprep.subr.bf16.mxu0 0
  %343 = vmatpush1.bf16.msra.mxu0 %v265
  %344 = vmatprep.subr.bf16.mxu0 0
  %345 = vmatpush2.bf16.msra.mxu0 0
  %346 = vmatprep.subr.bf16.mxu0 0
  %347 = vmatpush2.bf16.msra.mxu0 0
  %348 = vmatprep.subr.bf16.mxu0 0
  %349 = vmatpush2.bf16.msra.mxu0 0
  %350 = vmatprep.subr.bf16.mxu0 0
  %351 = vmatpush2.bf16.msra.mxu0 0
  %352 = vmatprep.subr.bf16.mxu0 0
  %353 = vmatpush2.bf16.msra.mxu0 0
  %354 = vmatprep.subr.bf16.mxu0 0
  %355 = vmatpush2.bf16.msra.mxu0 0
  %356 = vmatprep.subr.bf16.mxu0 0
  %357 = vmatpush2.bf16.msra.mxu0 0
  %358 = vmatprep.subr.bf16.mxu0 0
  %359 = vmatpush2.bf16.msra.mxu0 0
  %360 = vmatprep.mubr.bf16.mxu0 0
  %361 = vmatmul.mubr.bf16.gmra.mxu0 %v312
  %v362 = vpop.f32.mrf.mxu0
  %v363 = vadd.f32 %v278, %v362
  %v364 = vpop.f32.mrf.mxu0
  %v365 = vpop.f32.mrf.mxu0
  %v366 = vadd.f32 %v278, %v365
  %v367 = vpop.f32.mrf.mxu0
  %368 = vmatprep.mubr.bf16.mxu0 0
  %369 = vmatmul.mubr.bf16.gmra.mxu0 %v313
  %v370 = vpop.f32.mrf.mxu0
  %v371 = vadd.f32 %v278, %v370
  %v372 = vpop.f32.mrf.mxu0
  %v373 = vpop.f32.mrf.mxu0
  %v374 = vadd.f32 %v278, %v373
  %v375 = vpop.f32.mrf.mxu0
  %376 = vmatprep.mubr.bf16.mxu0 0
  %377 = vmatmul.mubr.bf16.gmra.mxu0 %v314
  %v378 = vpop.f32.mrf.mxu0
  %v379 = vadd.f32 %v278, %v378
  %v380 = vpop.f32.mrf.mxu0
  %v381 = vpop.f32.mrf.mxu0
  %v382 = vadd.f32 %v278, %v381
  %v383 = vpop.f32.mrf.mxu0
  %384 = vmatprep.mubr.bf16.mxu0 0
  %385 = vmatmul.mubr.bf16.gmra.mxu0 %v315
  %v386 = vpop.f32.mrf.mxu0
  %v387 = vadd.f32 %v278, %v386
  %v388 = vpop.f32.mrf.mxu0
  %v389 = vpop.f32.mrf.mxu0
  %v390 = vadd.f32 %v278, %v389
  %v391 = vpop.f32.mrf.mxu0
  %392 = vmatprep.mubr.bf16.mxu0 0
  %393 = vmatmul.mubr.bf16.gmra.mxu0 %v316
  %v394 = vpop.f32.mrf.mxu0
  %v395 = vadd.f32 %v278, %v394
  %v396 = vpop.f32.mrf.mxu0
  %v397 = vpop.f32.mrf.mxu0
  %v398 = vadd.f32 %v278, %v397
  %v399 = vpop.f32.mrf.mxu0
  %400 = vmatprep.mubr.bf16.mxu0 0
  %401 = vmatmul.mubr.bf16.gmra.mxu0 %v317
  %v402 = vpop.f32.mrf.mxu0
  %v403 = vadd.f32 %v278, %v402
  %v404 = vpop.f32.mrf.mxu0
  %v405 = vpop.f32.mrf.mxu0
  %v406 = vadd.f32 %v278, %v405
  %v407 = vpop.f32.mrf.mxu0
  %408 = vmatprep.mubr.bf16.mxu0 0
  %409 = vmatmul.mubr.bf16.gmra.mxu0 %v318
  %v410 = vpop.f32.mrf.mxu0
  %v411 = vadd.f32 %v278, %v410
  %v412 = vpop.f32.mrf.mxu0
  %v413 = vpop.f32.mrf.mxu0
  %v414 = vadd.f32 %v278, %v413
  %v415 = vpop.f32.mrf.mxu0
  %416 = vmatprep.mubr.bf16.mxu0 0
  %417 = vmatmul.mubr.bf16.gmra.mxu0 %v319
  %v418 = vpop.f32.mrf.mxu0
  %v419 = vadd.f32 %v278, %v418
  %v420 = vpop.f32.mrf.mxu0
  %v421 = vpop.f32.mrf.mxu0
  %v422 = vadd.f32 %v278, %v421
  %v423 = vpop.f32.mrf.mxu0
  %424 = vdwg.mxu0
  %v425 = vmax.f32 %v363, 0.0
  %v426 = vmax.f32 %v366, 0.0
  %v427 = vmax.f32 %v371, 0.0
  %v428 = vmax.f32 %v374, 0.0
  %v429 = vmax.f32 %v379, 0.0
  %v430 = vmax.f32 %v382, 0.0
  %v431 = vmax.f32 %v387, 0.0
  %v432 = vmax.f32 %v390, 0.0
  %v433 = vmax.f32 %v395, 0.0
  %v434 = vmax.f32 %v398, 0.0
  %v435 = vmax.f32 %v403, 0.0
  %v436 = vmax.f32 %v406, 0.0
  %v437 = vmax.f32 %v411, 0.0
  %v438 = vmax.f32 %v414, 0.0
  %v439 = vmax.f32 %v419, 0.0
  %v440 = vmax.f32 %v422, 0.0
  %v441 = vpack.c.bf16 %v426, %v425
  %v442 = vpack.c.bf16 %v428, %v427
  %v443 = vpack.c.bf16 %v430, %v429
  %v444 = vpack.c.bf16 %v432, %v431
  %v445 = vpack.c.bf16 %v434, %v433
  %v446 = vpack.c.bf16 %v436, %v435
  %v447 = vpack.c.bf16 %v438, %v437
  %v448 = vpack.c.bf16 %v440, %v439
  %v449 = vld [vmem:[%s4] sm:$0xf]
  %v450 = vld [vmem:[%s4 + $0x4] sm:$0xf]
  %v451 = vld [vmem:[%s4 + $0x8] sm:$0xf]
  %v452 = vld [vmem:[%s4 + $0xc] sm:$0xf]
  %v453 = vld [vmem:[%s4 + $0x10] sm:$0xf]
  %v454 = vld [vmem:[%s4 + $0x14] sm:$0xf]
  %v455 = vld [vmem:[%s4 + $0x18] sm:$0xf]
  %v456 = vld [vmem:[%s4 + $0x1c] sm:$0xf]
  %v457 = vld [vmem:[%s4 + $0x20] sm:$0xf]
  %v458 = vld [vmem:[%s4 + $0x24] sm:$0xf]
  %v459 = vld [vmem:[%s4 + $0x28] sm:$0xf]
  %v460 = vld [vmem:[%s4 + $0x2c] sm:$0xf]
  %v461 = vld [vmem:[%s4 + $0x30] sm:$0xf]
  %v462 = vld [vmem:[%s4 + $0x34] sm:$0xf]
  %v463 = vld [vmem:[%s4 + $0x38] sm:$0xf]
  %v464 = vld [vmem:[%s4 + $0x3c] sm:$0xf]
  %v481 = vunpack.c.l.b16 %v449
  %v482 = vunpack.c.l.b16 %v450
  %v483 = vunpack.c.l.b16 %v451
  %v484 = vunpack.c.l.b16 %v452
  %v485 = vunpack.c.l.b16 %v453
  %v486 = vunpack.c.l.b16 %v454
  %v487 = vunpack.c.l.b16 %v455
  %v488 = vunpack.c.l.b16 %v456
  %v489 = vunpack.c.l.b16 %v457
  %v490 = vunpack.c.l.b16 %v458
  %v491 = vunpack.c.l.b16 %v459
  %v492 = vunpack.c.l.b16 %v460
  %v493 = vunpack.c.l.b16 %v461
  %v494 = vunpack.c.l.b16 %v462
  %v495 = vunpack.c.l.b16 %v463
  %v496 = vunpack.c.l.b16 %v464
  %v497 = vpack.c.b16 %v482, %v481
  %v498 = vpack.c.b16 %v484, %v483
  %v499 = vpack.c.b16 %v486, %v485
  %v500 = vpack.c.b16 %v488, %v487
  %v501 = vpack.c.b16 %v490, %v489
  %v502 = vpack.c.b16 %v492, %v491
  %v503 = vpack.c.b16 %v494, %v493
  %v504 = vpack.c.b16 %v496, %v495
  %513 = vmatprep.subr.bf16.mxu0 0
  %514 = vmatpush1.bf16.msra.mxu0 %v504
  %515 = vmatprep.subr.bf16.mxu0 0
  %516 = vmatpush1.bf16.msra.mxu0 %v503
  %517 = vmatprep.subr.bf16.mxu0 0
  %518 = vmatpush1.bf16.msra.mxu0 %v502
  %519 = vmatprep.subr.bf16.mxu0 0
  %520 = vmatpush1.bf16.msra.mxu0 %v501
  %521 = vmatprep.subr.bf16.mxu0 0
  %522 = vmatpush1.bf16.msra.mxu0 %v500
  %523 = vmatprep.subr.bf16.mxu0 0
  %524 = vmatpush1.bf16.msra.mxu0 %v499
  %525 = vmatprep.subr.bf16.mxu0 0
  %526 = vmatpush1.bf16.msra.mxu0 %v498
  %527 = vmatprep.subr.bf16.mxu0 0
  %528 = vmatpush1.bf16.msra.mxu0 %v497
  %529 = vmatprep.subr.bf16.mxu0 0
  %530 = vmatpush2.bf16.msra.mxu0 0
  %531 = vmatprep.subr.bf16.mxu0 0
  %532 = vmatpush2.bf16.msra.mxu0 0
  %533 = vmatprep.subr.bf16.mxu0 0
  %534 = vmatpush2.bf16.msra.mxu0 0
  %535 = vmatprep.subr.bf16.mxu0 0
  %536 = vmatpush2.bf16.msra.mxu0 0
  %537 = vmatprep.subr.bf16.mxu0 0
  %538 = vmatpush2.bf16.msra.mxu0 0
  %539 = vmatprep.subr.bf16.mxu0 0
  %540 = vmatpush2.bf16.msra.mxu0 0
  %541 = vmatprep.subr.bf16.mxu0 0
  %542 = vmatpush2.bf16.msra.mxu0 0
  %543 = vmatprep.subr.bf16.mxu0 0
  %544 = vmatpush2.bf16.msra.mxu0 0
  %545 = vmatprep.mubr.bf16.mxu0 0
  %546 = vmatmul.mubr.bf16.gmra.mxu0 %v441
  %v547 = vpop.f32.mrf.mxu0
  %v548 = vadd.f32 0.0, %v547
  %v549 = vpop.f32.mrf.mxu0
  %v550 = vpop.f32.mrf.mxu0
  %v551 = vadd.f32 0.0, %v550
  %v552 = vpop.f32.mrf.mxu0
  %553 = vmatprep.mubr.bf16.mxu0 0
  %554 = vmatmul.mubr.bf16.gmra.mxu0 %v442
  %v555 = vpop.f32.mrf.mxu0
  %v556 = vadd.f32 0.0, %v555
  %v557 = vpop.f32.mrf.mxu0
  %v558 = vpop.f32.mrf.mxu0
  %v559 = vadd.f32 0.0, %v558
  %v560 = vpop.f32.mrf.mxu0
  %561 = vmatprep.mubr.bf16.mxu0 0
  %562 = vmatmul.mubr.bf16.gmra.mxu0 %v443
  %v563 = vpop.f32.mrf.mxu0
  %v564 = vadd.f32 0.0, %v563
  %v565 = vpop.f32.mrf.mxu0
  %v566 = vpop.f32.mrf.mxu0
  %v567 = vadd.f32 0.0, %v566
  %v568 = vpop.f32.mrf.mxu0
  %569 = vmatprep.mubr.bf16.mxu0 0
  %570 = vmatmul.mubr.bf16.gmra.mxu0 %v444
  %v571 = vpop.f32.mrf.mxu0
  %v572 = vadd.f32 0.0, %v571
  %v573 = vpop.f32.mrf.mxu0
  %v574 = vpop.f32.mrf.mxu0
  %v575 = vadd.f32 0.0, %v574
  %v576 = vpop.f32.mrf.mxu0
  %577 = vmatprep.mubr.bf16.mxu0 0
  %578 = vmatmul.mubr.bf16.gmra.mxu0 %v445
  %v579 = vpop.f32.mrf.mxu0
  %v580 = vadd.f32 0.0, %v579
  %v581 = vpop.f32.mrf.mxu0
  %v582 = vpop.f32.mrf.mxu0
  %v583 = vadd.f32 0.0, %v582
  %v584 = vpop.f32.mrf.mxu0
  %585 = vmatprep.mubr.bf16.mxu0 0
  %586 = vmatmul.mubr.bf16.gmra.mxu0 %v446
  %v587 = vpop.f32.mrf.mxu0
  %v588 = vadd.f32 0.0, %v587
  %v589 = vpop.f32.mrf.mxu0
  %v590 = vpop.f32.mrf.mxu0
  %v591 = vadd.f32 0.0, %v590
  %v592 = vpop.f32.mrf.mxu0
  %593 = vmatprep.mubr.bf16.mxu0 0
  %594 = vmatmul.mubr.bf16.gmra.mxu0 %v447
  %v595 = vpop.f32.mrf.mxu0
  %v596 = vadd.f32 0.0, %v595
  %v597 = vpop.f32.mrf.mxu0
  %v598 = vpop.f32.mrf.mxu0
  %v599 = vadd.f32 0.0, %v598
  %v600 = vpop.f32.mrf.mxu0
  %601 = vmatprep.mubr.bf16.mxu0 0
  %602 = vmatmul.mubr.bf16.gmra.mxu0 %v448
  %v603 = vpop.f32.mrf.mxu0
  %v604 = vadd.f32 0.0, %v603
  %v605 = vpop.f32.mrf.mxu0
  %v606 = vpop.f32.mrf.mxu0
  %v607 = vadd.f32 0.0, %v606
  %v608 = vpop.f32.mrf.mxu0
  %609 = vdwg.mxu0
  %v610 = vpack.c.bf16 %v551, %v548
  %v611 = vpack.c.bf16 %v559, %v556
  %v612 = vpack.c.bf16 %v567, %v564
  %v613 = vpack.c.bf16 %v575, %v572
  %v614 = vpack.c.bf16 %v583, %v580
  %v615 = vpack.c.bf16 %v591, %v588
  %v616 = vpack.c.bf16 %v599, %v596
  %v617 = vpack.c.bf16 %v607, %v604
  %v618 = vld [vmem:[%s5] sm:$0x1]
  %v620 = vlaneseq
  %v621 = vshrl.u32 %v620, 7
  %v622 = vsub.s32 0, %v621
  %v623 = vrot.slane %v618, %v622
  %625 = vmatprep.subr.bf16.mxu0 0
  %626 = vmatpush1.bf16.msra.mxu0 %v617
  %627 = vmatprep.subr.bf16.mxu0 0
  %628 = vmatpush1.bf16.msra.mxu0 %v616
  %629 = vmatprep.subr.bf16.mxu0 0
  %630 = vmatpush1.bf16.msra.mxu0 %v615
  %631 = vmatprep.subr.bf16.mxu0 0
  %632 = vmatpush1.bf16.msra.mxu0 %v614
  %633 = vmatprep.subr.bf16.mxu0 0
  %634 = vmatpush1.bf16.msra.mxu0 %v613
  %635 = vmatprep.subr.bf16.mxu0 0
  %636 = vmatpush1.bf16.msra.mxu0 %v612
  %637 = vmatprep.subr.bf16.mxu0 0
  %638 = vmatpush1.bf16.msra.mxu0 %v611
  %639 = vmatprep.subr.bf16.mxu0 0
  %640 = vmatpush1.bf16.msra.mxu0 %v610
  %641 = vmatprep.subr.bf16.mxu0 0
  %642 = vmatpush2.bf16.msra.mxu0 0
  %643 = vmatprep.subr.bf16.mxu0 0
  %644 = vmatpush2.bf16.msra.mxu0 0
  %645 = vmatprep.subr.bf16.mxu0 0
  %646 = vmatpush2.bf16.msra.mxu0 0
  %647 = vmatprep.subr.bf16.mxu0 0
  %648 = vmatpush2.bf16.msra.mxu0 0
  %649 = vmatprep.subr.bf16.mxu0 0
  %650 = vmatpush2.bf16.msra.mxu0 0
  %651 = vmatprep.subr.bf16.mxu0 0
  %652 = vmatpush2.bf16.msra.mxu0 0
  %653 = vmatprep.subr.bf16.mxu0 0
  %654 = vmatpush2.bf16.msra.mxu0 0
  %655 = vmatprep.subr.bf16.mxu0 0
  %656 = vmatpush2.bf16.msra.mxu0 0
  %657 = vmatprep.mubr.bf16.mxu0 0
  %658 = vmatmul.mubr.bf16.gmra.mxu0 %v312
  %v659 = vpop.f32.mrf.mxu0
  %v660 = vadd.f32 %v623, %v659
  %v661 = vpop.f32.mrf.mxu0
  %v662 = vpop.f32.mrf.mxu0
  %v663 = vadd.f32 %v623, %v662
  %v664 = vpop.f32.mrf.mxu0
  %665 = vmatprep.mubr.bf16.mxu0 0
  %666 = vmatmul.mubr.bf16.gmra.mxu0 %v313
  %v667 = vpop.f32.mrf.mxu0
  %v668 = vadd.f32 %v623, %v667
  %v669 = vpop.f32.mrf.mxu0
  %v670 = vpop.f32.mrf.mxu0
  %v671 = vadd.f32 %v623, %v670
  %v672 = vpop.f32.mrf.mxu0
  %673 = vmatprep.mubr.bf16.mxu0 0
  %674 = vmatmul.mubr.bf16.gmra.mxu0 %v314
  %v675 = vpop.f32.mrf.mxu0
  %v676 = vadd.f32 %v623, %v675
  %v677 = vpop.f32.mrf.mxu0
  %v678 = vpop.f32.mrf.mxu0
  %v679 = vadd.f32 %v623, %v678
  %v680 = vpop.f32.mrf.mxu0
  %681 = vmatprep.mubr.bf16.mxu0 0
  %682 = vmatmul.mubr.bf16.gmra.mxu0 %v315
  %v683 = vpop.f32.mrf.mxu0
  %v684 = vadd.f32 %v623, %v683
  %v685 = vpop.f32.mrf.mxu0
  %v686 = vpop.f32.mrf.mxu0
  %v687 = vadd.f32 %v623, %v686
  %v688 = vpop.f32.mrf.mxu0
  %689 = vmatprep.mubr.bf16.mxu0 0
  %690 = vmatmul.mubr.bf16.gmra.mxu0 %v316
  %v691 = vpop.f32.mrf.mxu0
  %v692 = vadd.f32 %v623, %v691
  %v693 = vpop.f32.mrf.mxu0
  %v694 = vpop.f32.mrf.mxu0
  %v695 = vadd.f32 %v623, %v694
  %v696 = vpop.f32.mrf.mxu0
  %697 = vmatprep.mubr.bf16.mxu0 0
  %698 = vmatmul.mubr.bf16.gmra.mxu0 %v317
  %v699 = vpop.f32.mrf.mxu0
  %v700 = vadd.f32 %v623, %v699
  %v701 = vpop.f32.mrf.mxu0
  %v702 = vpop.f32.mrf.mxu0
  %v703 = vadd.f32 %v623, %v702
  %v704 = vpop.f32.mrf.mxu0
  %705 = vmatprep.mubr.bf16.mxu0 0
  %706 = vmatmul.mubr.bf16.gmra.mxu0 %v318
  %v707 = vpop.f32.mrf.mxu0
  %v708 = vadd.f32 %v623, %v707
  %v709 = vpop.f32.mrf.mxu0
  %v710 = vpop.f32.mrf.mxu0
  %v711 = vadd.f32 %v623, %v710
  %v712 = vpop.f32.mrf.mxu0
  %713 = vmatprep.mubr.bf16.mxu0 0
  %714 = vmatmul.mubr.bf16.gmra.mxu0 %v319
  %v715 = vpop.f32.mrf.mxu0
  %v716 = vadd.f32 %v623, %v715
  %v717 = vpop.f32.mrf.mxu0
  %v718 = vpop.f32.mrf.mxu0
  %v719 = vadd.f32 %v623, %v718
  %v720 = vpop.f32.mrf.mxu0
  %721 = vdwg.mxu0
  %v722 = vlaneseq
  %v723 = vand.u32 %v722, 127
  %vm724 = vcmp.lt.s32.totalorder %v723, 8
  %v725 = vsel %vm724, %v660, -1e+30
  %v726 = vsel %vm724, %v663, -1e+30
  %v727 = vsel %vm724, %v668, -1e+30
  %v728 = vsel %vm724, %v671, -1e+30
  %v729 = vsel %vm724, %v676, -1e+30
  %v730 = vsel %vm724, %v679, -1e+30
  %v731 = vsel %vm724, %v684, -1e+30
  %v732 = vsel %vm724, %v687, -1e+30
  %v733 = vsel %vm724, %v692, -1e+30
  %v734 = vsel %vm724, %v695, -1e+30
  %v735 = vsel %vm724, %v700, -1e+30
  %v736 = vsel %vm724, %v703, -1e+30
  %v737 = vsel %vm724, %v708, -1e+30
  %v738 = vsel %vm724, %v711, -1e+30
  %v739 = vsel %vm724, %v716, -1e+30
  %v740 = vsel %vm724, %v719, -1e+30
  %741 = vmax.xlane.f32.xlu0 %v725
  %v742 = vpop.xlane.xlu0 %741
  %743 = vmax.xlane.f32.xlu0 %v726
  %v744 = vpop.xlane.xlu0 %743
  %745 = vmax.xlane.f32.xlu0 %v727
  %v746 = vpop.xlane.xlu0 %745
  %747 = vmax.xlane.f32.xlu0 %v728
  %v748 = vpop.xlane.xlu0 %747
  %749 = vmax.xlane.f32.xlu0 %v729
  %v750 = vpop.xlane.xlu0 %749
  %751 = vmax.xlane.f32.xlu0 %v730
  %v752 = vpop.xlane.xlu0 %751
  %753 = vmax.xlane.f32.xlu0 %v731
  %v754 = vpop.xlane.xlu0 %753
  %755 = vmax.xlane.f32.xlu0 %v732
  %v756 = vpop.xlane.xlu0 %755
  %757 = vmax.xlane.f32.xlu0 %v733
  %v758 = vpop.xlane.xlu0 %757
  %759 = vmax.xlane.f32.xlu0 %v734
  %v760 = vpop.xlane.xlu0 %759
  %761 = vmax.xlane.f32.xlu0 %v735
  %v762 = vpop.xlane.xlu0 %761
  %763 = vmax.xlane.f32.xlu0 %v736
  %v764 = vpop.xlane.xlu0 %763
  %765 = vmax.xlane.f32.xlu0 %v737
  %v766 = vpop.xlane.xlu0 %765
  %767 = vmax.xlane.f32.xlu0 %v738
  %v768 = vpop.xlane.xlu0 %767
  %769 = vmax.xlane.f32.xlu0 %v739
  %v770 = vpop.xlane.xlu0 %769
  %771 = vmax.xlane.f32.xlu0 %v740
  %v772 = vpop.xlane.xlu0 %771
  %v773 = vsub.f32 %v725, %v742
  %v774 = vsub.f32 %v726, %v744
  %v775 = vsub.f32 %v727, %v746
  %v776 = vsub.f32 %v728, %v748
  %v777 = vsub.f32 %v729, %v750
  %v778 = vsub.f32 %v730, %v752
  %v779 = vsub.f32 %v731, %v754
  %v780 = vsub.f32 %v732, %v756
  %v781 = vsub.f32 %v733, %v758
  %v782 = vsub.f32 %v734, %v760
  %v783 = vsub.f32 %v735, %v762
  %v784 = vsub.f32 %v736, %v764
  %v785 = vsub.f32 %v737, %v766
  %v786 = vsub.f32 %v738, %v768
  %v787 = vsub.f32 %v739, %v770
  %v788 = vsub.f32 %v740, %v772
  %v789 = vmul.f32 %v773, 1.442695
  %v790 = vpow.pop %v789
  %v791 = vmul.f32 %v774, 1.442695
  %v792 = vpow.pop %v791
  %v793 = vmul.f32 %v775, 1.442695
  %v794 = vpow.pop %v793
  %v795 = vmul.f32 %v776, 1.442695
  %v796 = vpow.pop %v795
  %v797 = vmul.f32 %v777, 1.442695
  %v798 = vpow.pop %v797
  %v799 = vmul.f32 %v778, 1.442695
  %v800 = vpow.pop %v799
  %v801 = vmul.f32 %v779, 1.442695
  %v802 = vpow.pop %v801
  %v803 = vmul.f32 %v780, 1.442695
  %v804 = vpow.pop %v803
  %v805 = vmul.f32 %v781, 1.442695
  %v806 = vpow.pop %v805
  %v807 = vmul.f32 %v782, 1.442695
  %v808 = vpow.pop %v807
  %v809 = vmul.f32 %v783, 1.442695
  %v810 = vpow.pop %v809
  %v811 = vmul.f32 %v784, 1.442695
  %v812 = vpow.pop %v811
  %v813 = vmul.f32 %v785, 1.442695
  %v814 = vpow.pop %v813
  %v815 = vmul.f32 %v786, 1.442695
  %v816 = vpow.pop %v815
  %v817 = vmul.f32 %v787, 1.442695
  %v818 = vpow.pop %v817
  %v819 = vmul.f32 %v788, 1.442695
  %v820 = vpow.pop %v819
  %v821 = vsel %vm724, %v790, 0.0
  %v822 = vsel %vm724, %v792, 0.0
  %v823 = vsel %vm724, %v794, 0.0
  %v824 = vsel %vm724, %v796, 0.0
  %v825 = vsel %vm724, %v798, 0.0
  %v826 = vsel %vm724, %v800, 0.0
  %v827 = vsel %vm724, %v802, 0.0
  %v828 = vsel %vm724, %v804, 0.0
  %v829 = vsel %vm724, %v806, 0.0
  %v830 = vsel %vm724, %v808, 0.0
  %v831 = vsel %vm724, %v810, 0.0
  %v832 = vsel %vm724, %v812, 0.0
  %v833 = vsel %vm724, %v814, 0.0
  %v834 = vsel %vm724, %v816, 0.0
  %v835 = vsel %vm724, %v818, 0.0
  %v836 = vsel %vm724, %v820, 0.0
  %837 = vadd.xlane.f32.xlu0 %v821
  %v838 = vpop.xlane.xlu0 %837
  %839 = vadd.xlane.f32.xlu0 %v822
  %v840 = vpop.xlane.xlu0 %839
  %841 = vadd.xlane.f32.xlu0 %v823
  %v842 = vpop.xlane.xlu0 %841
  %843 = vadd.xlane.f32.xlu0 %v824
  %v844 = vpop.xlane.xlu0 %843
  %845 = vadd.xlane.f32.xlu0 %v825
  %v846 = vpop.xlane.xlu0 %845
  %847 = vadd.xlane.f32.xlu0 %v826
  %v848 = vpop.xlane.xlu0 %847
  %849 = vadd.xlane.f32.xlu0 %v827
  %v850 = vpop.xlane.xlu0 %849
  %851 = vadd.xlane.f32.xlu0 %v828
  %v852 = vpop.xlane.xlu0 %851
  %853 = vadd.xlane.f32.xlu0 %v829
  %v854 = vpop.xlane.xlu0 %853
  %855 = vadd.xlane.f32.xlu0 %v830
  %v856 = vpop.xlane.xlu0 %855
  %857 = vadd.xlane.f32.xlu0 %v831
  %v858 = vpop.xlane.xlu0 %857
  %859 = vadd.xlane.f32.xlu0 %v832
  %v860 = vpop.xlane.xlu0 %859
  %861 = vadd.xlane.f32.xlu0 %v833
  %v862 = vpop.xlane.xlu0 %861
  %863 = vadd.xlane.f32.xlu0 %v834
  %v864 = vpop.xlane.xlu0 %863
  %865 = vadd.xlane.f32.xlu0 %v835
  %v866 = vpop.xlane.xlu0 %865
  %867 = vadd.xlane.f32.xlu0 %v836
  %v868 = vpop.xlane.xlu0 %867
  %v869 = vlog2.pop %v838
  %v870 = vmul.f32 %v869, 0.6931472
  %v871 = vlog2.pop %v840
  %v872 = vmul.f32 %v871, 0.6931472
  %v873 = vlog2.pop %v842
  %v874 = vmul.f32 %v873, 0.6931472
  %v875 = vlog2.pop %v844
  %v876 = vmul.f32 %v875, 0.6931472
  %v877 = vlog2.pop %v846
  %v878 = vmul.f32 %v877, 0.6931472
  %v879 = vlog2.pop %v848
  %v880 = vmul.f32 %v879, 0.6931472
  %v881 = vlog2.pop %v850
  %v882 = vmul.f32 %v881, 0.6931472
  %v883 = vlog2.pop %v852
  %v884 = vmul.f32 %v883, 0.6931472
  %v885 = vlog2.pop %v854
  %v886 = vmul.f32 %v885, 0.6931472
  %v887 = vlog2.pop %v856
  %v888 = vmul.f32 %v887, 0.6931472
  %v889 = vlog2.pop %v858
  %v890 = vmul.f32 %v889, 0.6931472
  %v891 = vlog2.pop %v860
  %v892 = vmul.f32 %v891, 0.6931472
  %v893 = vlog2.pop %v862
  %v894 = vmul.f32 %v893, 0.6931472
  %v895 = vlog2.pop %v864
  %v896 = vmul.f32 %v895, 0.6931472
  %v897 = vlog2.pop %v866
  %v898 = vmul.f32 %v897, 0.6931472
  %v899 = vlog2.pop %v868
  %v900 = vmul.f32 %v899, 0.6931472
  %v901 = vsub.f32 %v773, %v870
  %v902 = vsub.f32 %v774, %v872
  %v903 = vsub.f32 %v775, %v874
  %v904 = vsub.f32 %v776, %v876
  %v905 = vsub.f32 %v777, %v878
  %v906 = vsub.f32 %v778, %v880
  %v907 = vsub.f32 %v779, %v882
  %v908 = vsub.f32 %v780, %v884
  %v909 = vsub.f32 %v781, %v886
  %v910 = vsub.f32 %v782, %v888
  %v911 = vsub.f32 %v783, %v890
  %v912 = vsub.f32 %v784, %v892
  %v913 = vsub.f32 %v785, %v894
  %v914 = vsub.f32 %v786, %v896
  %v915 = vsub.f32 %v787, %v898
  %v916 = vsub.f32 %v788, %v900
  %917 = vst [vmem:[%s6] sm:$0xff] %v901
  %918 = vst [vmem:[%s6 + $0x8] sm:$0xff] %v902
  %919 = vst [vmem:[%s6 + $0x10] sm:$0xff] %v903
  %920 = vst [vmem:[%s6 + $0x18] sm:$0xff] %v904
  %921 = vst [vmem:[%s6 + $0x20] sm:$0xff] %v905
  %922 = vst [vmem:[%s6 + $0x28] sm:$0xff] %v906
  %923 = vst [vmem:[%s6 + $0x30] sm:$0xff] %v907
  %924 = vst [vmem:[%s6 + $0x38] sm:$0xff] %v908
  %925 = vst [vmem:[%s6 + $0x40] sm:$0xff] %v909
  %926 = vst [vmem:[%s6 + $0x48] sm:$0xff] %v910
  %927 = vst [vmem:[%s6 + $0x50] sm:$0xff] %v911
  %928 = vst [vmem:[%s6 + $0x58] sm:$0xff] %v912
  %929 = vst [vmem:[%s6 + $0x60] sm:$0xff] %v913
  %930 = vst [vmem:[%s6 + $0x68] sm:$0xff] %v914
  %931 = vst [vmem:[%s6 + $0x70] sm:$0xff] %v915
  %932 = vst [vmem:[%s6 + $0x78] sm:$0xff] %v916
  // Predicated region
  $region26: #{gcn_forward.1} parent=0 // pred_check
    _
  $region27: #{gcn_forward.1} parent=0 // pred_check_branch
    %934 = sbr.rel (0) target = $region29
  $region28: #{gcn_forward.1} parent=0 // pred_region
    _
  $region29: #{gcn_forward.1} parent=0 // pred_fallthru
    _
  // Predicated region
  $region30: #{gcn_forward.1} parent=0 // pred_check
    _
  $region31: #{gcn_forward.1} parent=0 // pred_check_branch
    %936 = sbr.rel (0) target = $region33
  $region32: #{gcn_forward.1} parent=0 // pred_region
    _
  $region33: #{gcn_forward.1} parent=0 // pred_fallthru
    _

</llo_original>
